<compile_context>
chip_gen: v5e
topology: v5e:2x2
jax: 0.10.0
libtpu: 0.0.40
codegen_flags: <defaults>
</compile_context>

<pallas_src>
import jax
import jax.numpy as jnp
from jax.experimental import pallas as pl
from jax.experimental.pallas import tpu as pltpu

F_IN = 115                  # raw feature count (nn.Linear(115, 128))
H1, H2, H3 = 128, 256, 64
MAX_TILE_B = 4096           # batch tile cap: multiple of 256 (v6e/v7x MXU) and 128 (v5e)


def _round_up(x, m):
    return (x + m - 1) // m * m


def _cdiv(a, b):
    return -(-a // b)


def _choose_tile(B):
    """Pick the batch tile size.

    * B <= 256: single latency-bound tile, rounded to the bf16 sublane granularity (16).
    * B  > 256: balance the work over >= 2 tiles (v7x megacore) of at most MAX_TILE_B,
      rounded to 256 so padding waste stays small (e.g. B=1500 -> 2 x 768, <3% padding).
    """
    if B <= 256:
        return _round_up(max(B, 1), 16)
    n_tiles = max(2, _cdiv(B, MAX_TILE_B))
    return min(MAX_TILE_B, _round_up(_cdiv(B, n_tiles), 256))


def mlp_kernel(x_ref,
               w1_ref, b1_ref,
               w2_ref, b2_ref,
               w3_ref, b3_ref,
               w4_ref, b4_ref,
               o_ref):
    """Fused (Linear+ReLU)x3 + Linear(64->1) for one batch tile.

    MXU matmuls in bf16 with f32 accumulation.  Layers 1-2 use a bf16 bias+ReLU
    epilogue (their result feeds a bf16 matmul anyway); layer 3 + head stay f32.
    The 64->1 head is a VPU multiply + lane reduce.  Dropout -> identity (eval).
    """
    x = x_ref[...].astype(jnp.bfloat16)                                  # (TB, 115)

    # Layer 1: K=115 (Mosaic pads the contraction dim internally).
    h1 = jnp.dot(x, w1_ref[...], preferred_element_type=jnp.float32)     # (TB, 128) f32
    h1 = jnp.maximum(h1.astype(jnp.bfloat16) + b1_ref[...], 0.0)         # bf16 epilogue

    h2 = jnp.dot(h1, w2_ref[...], preferred_element_type=jnp.float32)    # (TB, 256) f32
    h2 = jnp.maximum(h2.astype(jnp.bfloat16) + b2_ref[...], 0.0)         # bf16 epilogue

    h3 = jnp.dot(h2, w3_ref[...], preferred_element_type=jnp.float32) + b3_ref[...]
    h3 = jnp.maximum(h3, 0.0)                                            # (TB, 64) f32

    # Linear(64 -> 1): elementwise multiply + lane reduction instead of a 1-column matmul.
    out = jnp.sum(h3 * w4_ref[...], axis=-1, keepdims=True) + b4_ref[...]
    o_ref[...] = out.astype(o_ref.dtype)                                 # (TB, 1)


def _pack_params(params):
    """Cast MXU weights (and layer-1/2 biases) to bf16; keep the f32 epilogue params."""
    w1 = params["w1"].astype(jnp.bfloat16)                    # (115, 128)
    b1 = params["b1"].astype(jnp.bfloat16)                    # (1, 128)
    w2 = params["w2"].astype(jnp.bfloat16)                    # (128, 256)
    b2 = params["b2"].astype(jnp.bfloat16)                    # (1, 256)
    w3 = params["w3"].astype(jnp.bfloat16)                    # (256, 64)
    b3 = params["b3"].astype(jnp.float32)                     # (1, 64)
    w4_row = params["w4"].reshape(1, H3).astype(jnp.float32)  # (1, 64), used on the VPU
    b4 = params["b4"].reshape(1, 1).astype(jnp.float32)       # (1, 1)
    return (w1, b1, w2, b2, w3, b3, w4_row, b4)


@jax.jit
def aftershock_classifier(x, params):
    """x: (B, 115) float32 -> (B, 1) float32 logits (pre-sigmoid, matching PyTorch)."""
    B = x.shape[0]
    tb = _choose_tile(B)
    bp = _round_up(B, tb)
    grid = (bp // tb,)

    # Only batch padding on the host; features stay at 115 and are consumed raw (f32).
    xp = x if bp == B else jnp.pad(x, ((0, bp - B), (0, 0)))
    xp = xp.astype(jnp.float32)

    w1, b1, w2, b2, w3, b3, w4_row, b4 = _pack_params(params)

    weight_bytes = 2 * (F_IN * H1 + H1 * H2 + H2 * H3) + 2 * (H1 + H2) + 4 * (H3 + H3 + 1)
    cost = pl.CostEstimate(
        flops=2 * bp * (F_IN * H1 + H1 * H2 + H2 * H3 + H3),
        transcendentals=0,
        bytes_accessed=bp * (F_IN * 4 + 4) + weight_bytes,
    )

    const = lambda i: (0, 0)  # same block every step -> weights stay resident in VMEM
    out = pl.pallas_call(
        mlp_kernel,
        out_shape=jax.ShapeDtypeStruct((bp, 1), jnp.float32),
        grid=grid,
        in_specs=[
            pl.BlockSpec((tb, F_IN), lambda i: (i, 0)),   # x: batch-tiled, double-buffered
            pl.BlockSpec((F_IN, H1), const),
            pl.BlockSpec((1, H1), const),
            pl.BlockSpec((H1, H2), const),
            pl.BlockSpec((1, H2), const),
            pl.BlockSpec((H2, H3), const),
            pl.BlockSpec((1, H3), const),
            pl.BlockSpec((1, H3), const),                 # w4 as a (1, 64) row
            pl.BlockSpec((1, 1), const),
        ],
        out_specs=pl.BlockSpec((tb, 1), lambda i: (i, 0)),
        compiler_params=pltpu.CompilerParams(
            dimension_semantics=("parallel",),   # batch tiles shard across v7x's 2 TCs
            vmem_limit_bytes=48 * 1024 * 1024,   # ~15 MB/tile footprint at TB=4096; < v7x 64 MiB
        ),
        cost_estimate=cost,
    )(xp, w1, b1, w2, b2, w3, b3, w4_row, b4)
    return out[:B]


def init_params(key):
    """Synthetic params matching the PyTorch module's shapes.

    PyTorch nn.Linear stores weight as (out, in); here weights are kept (in, out)
    so the kernel computes x @ W + b (mathematically identical to x @ W_pt.T + b).
    """
    dims = [(F_IN, H1), (H1, H2), (H2, H3), (H3, 1)]
    params = {}
    keys = jax.random.split(key, len(dims))
    for i, ((fin, fout), k) in enumerate(zip(dims, keys), start=1):
        kw, kb = jax.random.split(k)
        bound = 1.0 / jnp.sqrt(fin)
        params[f"w{i}"] = jax.random.uniform(kw, (fin, fout), jnp.float32, -bound, bound)
        params[f"b{i}"] = jax.random.uniform(kb, (1, fout), jnp.float32, -bound, bound)
    return params


def reference_forward(x, params):
    h = jnp.maximum(x @ params["w1"] + params["b1"], 0.0)
    h = jnp.maximum(h @ params["w2"] + params["b2"], 0.0)
    h = jnp.maximum(h @ params["w3"] + params["b3"], 0.0)
    return h @ params["w4"] + params["b4"]


if __name__ == "__main__":
    key = jax.random.PRNGKey(0)
    kx, kp = jax.random.split(key)

    B = 8
    x = jax.random.normal(kx, (B, F_IN), jnp.float32)
    params = init_params(kp)

    out = jax.block_until_ready(aftershock_classifier(x, params))
    ref = reference_forward(x, params)

    assert out.shape == (B, 1), out.shape
    # bf16 matmul inputs/biases (f32 accumulation) -> compare against the f32 reference loosely.
    assert jnp.allclose(out, ref, atol=5e-2, rtol=5e-2), \
        f"mismatch vs reference; max |diff| = {jnp.max(jnp.abs(out - ref))}"

    print("KERNEL_OK")
</pallas_src>

<mosaic_0001>
module attributes {stable_mosaic.version = 11 : i64} {
  func.func @mlp_kernel(%arg0: i32, %arg1: memref<16x115xf32, #tpu.memory_space<vmem>>, %arg2: memref<115x128xbf16, #tpu.memory_space<vmem>>, %arg3: memref<1x128xbf16, #tpu.memory_space<vmem>>, %arg4: memref<128x256xbf16, #tpu.memory_space<vmem>>, %arg5: memref<1x256xbf16, #tpu.memory_space<vmem>>, %arg6: memref<256x64xbf16, #tpu.memory_space<vmem>>, %arg7: memref<1x64xf32, #tpu.memory_space<vmem>>, %arg8: memref<1x64xf32, #tpu.memory_space<vmem>>, %arg9: memref<1x1xf32, #tpu.memory_space<vmem>>, %arg10: memref<16x1xf32, #tpu.memory_space<vmem>>) attributes {dimension_semantics = [#tpu.dimension_semantics<parallel>], iteration_bounds = array<i64: 1>, scalar_prefetch = 0 : i64, scratch_operands = 0 : i64, tpu.core_type = #tpu.core_type<tc>, window_params = [{transform_indices = @transform_0, window_bounds = array<i64: 16, 115>}, {pipeline_mode = #tpu.pipeline_mode<synchronous>, transform_indices = @transform_1, window_bounds = array<i64: 115, 128>}, {pipeline_mode = #tpu.pipeline_mode<synchronous>, transform_indices = @transform_2, window_bounds = array<i64: 1, 128>}, {pipeline_mode = #tpu.pipeline_mode<synchronous>, transform_indices = @transform_3, window_bounds = array<i64: 128, 256>}, {pipeline_mode = #tpu.pipeline_mode<synchronous>, transform_indices = @transform_4, window_bounds = array<i64: 1, 256>}, {pipeline_mode = #tpu.pipeline_mode<synchronous>, transform_indices = @transform_5, window_bounds = array<i64: 256, 64>}, {pipeline_mode = #tpu.pipeline_mode<synchronous>, transform_indices = @transform_6, window_bounds = array<i64: 1, 64>}, {pipeline_mode = #tpu.pipeline_mode<synchronous>, transform_indices = @transform_7, window_bounds = array<i64: 1, 64>}, {pipeline_mode = #tpu.pipeline_mode<synchronous>, transform_indices = @transform_8, window_bounds = array<i64: 1, 1>}, {transform_indices = @transform_9, window_bounds = array<i64: 16, 1>}]} {
    %c0 = arith.constant 0 : index
    %c0_0 = arith.constant 0 : index
    %0 = vector.load %arg1[%c0, %c0_0] : memref<16x115xf32, #tpu.memory_space<vmem>>, vector<16x115xf32>
    %1 = arith.truncf %0 : vector<16x115xf32> to vector<16x115xbf16>
    %c0_1 = arith.constant 0 : index
    %c0_2 = arith.constant 0 : index
    %2 = vector.load %arg2[%c0_1, %c0_2] : memref<115x128xbf16, #tpu.memory_space<vmem>>, vector<115x128xbf16>
    %cst = arith.constant dense<0.000000e+00> : vector<16x128xf32>
    %3 = tpu.matmul %1, %2, %cst {dimension_numbers = #tpu.dot_dimension_numbers<[1], [0], [0], [1], [0, 0, 1, 1], [], []>} : vector<16x115xbf16>, vector<115x128xbf16>, vector<16x128xf32> -> vector<16x128xf32>
    %4 = arith.truncf %3 : vector<16x128xf32> to vector<16x128xbf16>
    %c0_3 = arith.constant 0 : index
    %c0_4 = arith.constant 0 : index
    %5 = vector.load %arg3[%c0_3, %c0_4] : memref<1x128xbf16, #tpu.memory_space<vmem>>, vector<1x128xbf16>
    %6 = vector.broadcast %5 : vector<1x128xbf16> to vector<16x128xbf16>
    %7 = arith.addf %4, %6 : vector<16x128xbf16>
    %cst_5 = arith.constant 0.000000e+00 : bf16
    %8 = vector.broadcast %cst_5 : bf16 to vector<16x128xbf16>
    %9 = arith.maximumf %7, %8 : vector<16x128xbf16>
    %c0_6 = arith.constant 0 : index
    %c0_7 = arith.constant 0 : index
    %10 = vector.load %arg4[%c0_6, %c0_7] : memref<128x256xbf16, #tpu.memory_space<vmem>>, vector<128x256xbf16>
    %cst_8 = arith.constant dense<0.000000e+00> : vector<16x256xf32>
    %11 = tpu.matmul %9, %10, %cst_8 {dimension_numbers = #tpu.dot_dimension_numbers<[1], [0], [0], [1], [0, 0, 1, 1], [], []>} : vector<16x128xbf16>, vector<128x256xbf16>, vector<16x256xf32> -> vector<16x256xf32>
    %12 = arith.truncf %11 : vector<16x256xf32> to vector<16x256xbf16>
    %c0_9 = arith.constant 0 : index
    %c0_10 = arith.constant 0 : index
    %13 = vector.load %arg5[%c0_9, %c0_10] : memref<1x256xbf16, #tpu.memory_space<vmem>>, vector<1x256xbf16>
    %14 = vector.broadcast %13 : vector<1x256xbf16> to vector<16x256xbf16>
    %15 = arith.addf %12, %14 : vector<16x256xbf16>
    %cst_11 = arith.constant 0.000000e+00 : bf16
    %16 = vector.broadcast %cst_11 : bf16 to vector<16x256xbf16>
    %17 = arith.maximumf %15, %16 : vector<16x256xbf16>
    %c0_12 = arith.constant 0 : index
    %c0_13 = arith.constant 0 : index
    %18 = vector.load %arg6[%c0_12, %c0_13] : memref<256x64xbf16, #tpu.memory_space<vmem>>, vector<256x64xbf16>
    %cst_14 = arith.constant dense<0.000000e+00> : vector<16x64xf32>
    %19 = tpu.matmul %17, %18, %cst_14 {dimension_numbers = #tpu.dot_dimension_numbers<[1], [0], [0], [1], [0, 0, 1, 1], [], []>} : vector<16x256xbf16>, vector<256x64xbf16>, vector<16x64xf32> -> vector<16x64xf32>
    %c0_15 = arith.constant 0 : index
    %c0_16 = arith.constant 0 : index
    %20 = vector.load %arg7[%c0_15, %c0_16] : memref<1x64xf32, #tpu.memory_space<vmem>>, vector<1x64xf32>
    %21 = vector.broadcast %20 : vector<1x64xf32> to vector<16x64xf32>
    %22 = arith.addf %19, %21 : vector<16x64xf32>
    %cst_17 = arith.constant 0.000000e+00 : f32
    %23 = vector.broadcast %cst_17 : f32 to vector<16x64xf32>
    %24 = arith.maximumf %22, %23 : vector<16x64xf32>
    %c0_18 = arith.constant 0 : index
    %c0_19 = arith.constant 0 : index
    %25 = vector.load %arg8[%c0_18, %c0_19] : memref<1x64xf32, #tpu.memory_space<vmem>>, vector<1x64xf32>
    %26 = vector.broadcast %25 : vector<1x64xf32> to vector<16x64xf32>
    %27 = arith.mulf %24, %26 : vector<16x64xf32>
    %cst_20 = arith.constant dense<0.000000e+00> : vector<16xf32>
    %28 = vector.multi_reduction <add>, %27, %cst_20 [1] : vector<16x64xf32> to vector<16xf32>
    %29 = vector.shape_cast %28 : vector<16xf32> to vector<16x1xf32>
    %c0_21 = arith.constant 0 : index
    %c0_22 = arith.constant 0 : index
    %30 = vector.load %arg9[%c0_21, %c0_22] : memref<1x1xf32, #tpu.memory_space<vmem>>, vector<1x1xf32>
    %31 = vector.broadcast %30 : vector<1x1xf32> to vector<16x1xf32>
    %32 = arith.addf %29, %31 : vector<16x1xf32>
    %c0_23 = arith.constant 0 : index
    %c0_24 = arith.constant 0 : index
    %33 = vector.load %arg10[%c0_23, %c0_24] : memref<16x1xf32, #tpu.memory_space<vmem>>, vector<16x1xf32>
    tpu.vector_store %arg10[%c0_23, %c0_24], %32 {strides = array<i32>} : memref<16x1xf32, #tpu.memory_space<vmem>>, vector<16x1xf32>,
    return
  }
  func.func @transform_0(%arg0: i32) -> (i32, i32) {
    %c0_i32 = arith.constant 0 : i32
    %c0_i32_0 = arith.constant 0 : i32
    return %arg0, %c0_i32 : i32, i32
  }
  func.func @transform_1(%arg0: i32) -> (i32, i32) {
    %c0_i32 = arith.constant 0 : i32
    %c0_i32_0 = arith.constant 0 : i32
    %c0_i32_1 = arith.constant 0 : i32
    return %c0_i32, %c0_i32_0 : i32, i32
  }
  func.func @transform_2(%arg0: i32) -> (i32, i32) {
    %c0_i32 = arith.constant 0 : i32
    %c0_i32_0 = arith.constant 0 : i32
    %c0_i32_1 = arith.constant 0 : i32
    return %c0_i32, %c0_i32_0 : i32, i32
  }
  func.func @transform_3(%arg0: i32) -> (i32, i32) {
    %c0_i32 = arith.constant 0 : i32
    %c0_i32_0 = arith.constant 0 : i32
    %c0_i32_1 = arith.constant 0 : i32
    return %c0_i32, %c0_i32_0 : i32, i32
  }
  func.func @transform_4(%arg0: i32) -> (i32, i32) {
    %c0_i32 = arith.constant 0 : i32
    %c0_i32_0 = arith.constant 0 : i32
    %c0_i32_1 = arith.constant 0 : i32
    return %c0_i32, %c0_i32_0 : i32, i32
  }
  func.func @transform_5(%arg0: i32) -> (i32, i32) {
    %c0_i32 = arith.constant 0 : i32
    %c0_i32_0 = arith.constant 0 : i32
    %c0_i32_1 = arith.constant 0 : i32
    return %c0_i32, %c0_i32_0 : i32, i32
  }
  func.func @transform_6(%arg0: i32) -> (i32, i32) {
    %c0_i32 = arith.constant 0 : i32
    %c0_i32_0 = arith.constant 0 : i32
    %c0_i32_1 = arith.constant 0 : i32
    return %c0_i32, %c0_i32_0 : i32, i32
  }
  func.func @transform_7(%arg0: i32) -> (i32, i32) {
    %c0_i32 = arith.constant 0 : i32
    %c0_i32_0 = arith.constant 0 : i32
    %c0_i32_1 = arith.constant 0 : i32
    return %c0_i32, %c0_i32_0 : i32, i32
  }
  func.func @transform_8(%arg0: i32) -> (i32, i32) {
    %c0_i32 = arith.constant 0 : i32
    %c0_i32_0 = arith.constant 0 : i32
    %c0_i32_1 = arith.constant 0 : i32
    return %c0_i32, %c0_i32_0 : i32, i32
  }
  func.func @transform_9(%arg0: i32) -> (i32, i32) {
    %c0_i32 = arith.constant 0 : i32
    %c0_i32_0 = arith.constant 0 : i32
    return %arg0, %c0_i32 : i32, i32
  }
}

</mosaic_0001>

<llo_original>
// kernel: aftershock_classifier.1
$region0: #{aftershock_classifier.1}
  #allocation0 [shape = 'u32[]', space=smem, size = 0x4, offset = 0x4, fixed_abs, tag = 'smem constant byte address 0x4 - core index']
  #allocation1 [shape = 'u32[72,128]{1,0:T(1,128)}', space=vmem, size = 0x9000, scoped, tag = 'internal scratch']
  #allocation2 [shape = 'f32[1,1]{1,0:T(1,128)S(1)}', space=vmem, size = 0x200, scoped, tag = 'scoped memory for aftershock_classifier.1']
  %s0 = inlined_call_operand.vmem [shape: f32[16,115], index: 0, kind: input, shape index: {}]
  %s1 = inlined_call_operand.vmem [shape: bf16[115,128], index: 1, kind: input, shape index: {}]
  %s2 = inlined_call_operand.vmem [shape: bf16[1,128], index: 2, kind: input, shape index: {}]
  %s3 = inlined_call_operand.vmem [shape: bf16[128,256], index: 3, kind: input, shape index: {}]
  %s4 = inlined_call_operand.vmem [shape: bf16[1,256], index: 4, kind: input, shape index: {}]
  %s5 = inlined_call_operand.vmem [shape: bf16[256,64], index: 5, kind: input, shape index: {}]
  %s6 = inlined_call_operand.vmem [shape: f32[1,64], index: 6, kind: input, shape index: {}]
  %s7 = inlined_call_operand.vmem [shape: f32[1,64], index: 7, kind: input, shape index: {}]
  %s8 = inlined_call_operand.<no memory space> [shape: f32[1,1], index: 8, kind: input, shape index: {}]
  %s9 = inlined_call_operand.vmem [shape: f32[16,1], index: 9, kind: output, shape index: {}]
  %s10 = sld [smem:[#allocation0]]
  $region46: #{aftershock_classifier.1} parent=0
    _
  %s12 = ssub.s32 1, %s10
  %s13 = scalar_select 0, %s12, %s10
  %v14 = vstv %s8
  %15 = vst [vmem:[#allocation2] sm:$0x1] %v14
  // Predicated region
  $region2: #{aftershock_classifier.1} parent=0 // pred_check
    _
  $region3: #{aftershock_classifier.1} parent=0 // pred_check_branch
    %17 = sbr.rel (0) target = $region5
  $region4: #{aftershock_classifier.1} parent=0 // pred_region
    _
  $region5: #{aftershock_classifier.1} parent=0 // pred_fallthru
    _
  // Predicated region
  $region6: #{aftershock_classifier.1} parent=0 // pred_check
    _
  $region7: #{aftershock_classifier.1} parent=0 // pred_check_branch
    %19 = sbr.rel (0) target = $region9
  $region8: #{aftershock_classifier.1} parent=0 // pred_region
    _
  $region9: #{aftershock_classifier.1} parent=0 // pred_fallthru
    _
  // Predicated region
  $region10: #{aftershock_classifier.1} parent=0 // pred_check
    _
  $region11: #{aftershock_classifier.1} parent=0 // pred_check_branch
    %21 = sbr.rel (0) target = $region13
  $region12: #{aftershock_classifier.1} parent=0 // pred_region
    _
  $region13: #{aftershock_classifier.1} parent=0 // pred_fallthru
    _
  // Predicated region
  $region14: #{aftershock_classifier.1} parent=0 // pred_check
    _
  $region15: #{aftershock_classifier.1} parent=0 // pred_check_branch
    %23 = sbr.rel (0) target = $region17
  $region16: #{aftershock_classifier.1} parent=0 // pred_region
    _
  $region17: #{aftershock_classifier.1} parent=0 // pred_fallthru
    _
  // Predicated region
  $region18: #{aftershock_classifier.1} parent=0 // pred_check
    _
  $region19: #{aftershock_classifier.1} parent=0 // pred_check_branch
    %25 = sbr.rel (0) target = $region21
  $region20: #{aftershock_classifier.1} parent=0 // pred_region
    _
  $region21: #{aftershock_classifier.1} parent=0 // pred_fallthru
    _
  // Predicated region
  $region22: #{aftershock_classifier.1} parent=0 // pred_check
    _
  $region23: #{aftershock_classifier.1} parent=0 // pred_check_branch
    %27 = sbr.rel (0) target = $region25
  $region24: #{aftershock_classifier.1} parent=0 // pred_region
    _
  $region25: #{aftershock_classifier.1} parent=0 // pred_fallthru
    _
  // Predicated region
  $region26: #{aftershock_classifier.1} parent=0 // pred_check
    _
  $region27: #{aftershock_classifier.1} parent=0 // pred_check_branch
    %29 = sbr.rel (0) target = $region29
  $region28: #{aftershock_classifier.1} parent=0 // pred_region
    _
  $region29: #{aftershock_classifier.1} parent=0 // pred_fallthru
    _
  // Predicated region
  $region30: #{aftershock_classifier.1} parent=0 // pred_check
    _
  $region31: #{aftershock_classifier.1} parent=0 // pred_check_branch
    %31 = sbr.rel (0) target = $region33
  $region32: #{aftershock_classifier.1} parent=0 // pred_region
    _
  $region33: #{aftershock_classifier.1} parent=0 // pred_fallthru
    _
  // Predicated region
  $region34: #{aftershock_classifier.1} parent=0 // pred_check
    _
  $region35: #{aftershock_classifier.1} parent=0 // pred_check_branch
    %33 = sbr.rel (0) target = $region37
  $region36: #{aftershock_classifier.1} parent=0 // pred_region
    _
  $region37: #{aftershock_classifier.1} parent=0 // pred_fallthru
    _
  %v34 = vld [vmem:[%s0] sm:$0xff]
  %v35 = vld [vmem:[%s0 + $0x8] sm:$0xff]
  %v36 = vpack.c.bf16 %v35, %v34
  %v37 = vld [vmem:[%s1] sm:$0xf]
  %v38 = vld [vmem:[%s1 + $0x4] sm:$0xf]
  %v39 = vld [vmem:[%s1 + $0x8] sm:$0xf]
  %v40 = vld [vmem:[%s1 + $0xc] sm:$0xf]
  %v41 = vld [vmem:[%s1 + $0x10] sm:$0xf]
  %v42 = vld [vmem:[%s1 + $0x14] sm:$0xf]
  %v43 = vld [vmem:[%s1 + $0x18] sm:$0xf]
  %v44 = vld [vmem:[%s1 + $0x1c] sm:$0xf]
  %v45 = vld [vmem:[%s1 + $0x20] sm:$0xf]
  %v46 = vld [vmem:[%s1 + $0x24] sm:$0xf]
  %v47 = vld [vmem:[%s1 + $0x28] sm:$0xf]
  %v48 = vld [vmem:[%s1 + $0x2c] sm:$0xf]
  %v49 = vld [vmem:[%s1 + $0x30] sm:$0xf]
  %v50 = vld [vmem:[%s1 + $0x34] sm:$0xf]
  %v51 = vld [vmem:[%s1 + $0x38] sm:$0x3]
  %v67 = vunpack.c.l.b16 %v37
  %v68 = vunpack.c.l.b16 %v38
  %v69 = vunpack.c.l.b16 %v39
  %v70 = vunpack.c.l.b16 %v40
  %v71 = vunpack.c.l.b16 %v41
  %v72 = vunpack.c.l.b16 %v42
  %v73 = vunpack.c.l.b16 %v43
  %v74 = vunpack.c.l.b16 %v44
  %v75 = vunpack.c.l.b16 %v45
  %v76 = vunpack.c.l.b16 %v46
  %v77 = vunpack.c.l.b16 %v47
  %v78 = vunpack.c.l.b16 %v48
  %v79 = vunpack.c.l.b16 %v49
  %v80 = vunpack.c.l.b16 %v50
  %v81 = vunpack.c.l.b16 %v51
  %v82 = vpack.c.b16 %v68, %v67
  %v83 = vpack.c.b16 %v70, %v69
  %v84 = vpack.c.b16 %v72, %v71
  %v85 = vpack.c.b16 %v74, %v73
  %v86 = vpack.c.b16 %v76, %v75
  %v87 = vpack.c.b16 %v78, %v77
  %v88 = vpack.c.b16 %v80, %v79
  %v89 = vpack.c.b16 %v81, %v81
  %vm97 = vcmask 941056
  %v99 = vsel %vm97, %v36, 0
  %vm101 = vcmask 1040384
  %vm102 = vcmask 1041408
  %v103 = vsel %vm101, 4294967295, 65535
  %v104 = vsel %vm102, %v103, 0
  %v106 = vand.u32 %v89, %v104
  %108 = vmatpush.bf16.msra.mxu0 %v106
  %109 = vmatpush.bf16.msra.mxu0 %v88
  %110 = vmatpush.bf16.msra.mxu0 %v87
  %111 = vmatpush.bf16.msra.mxu0 %v86
  %112 = vmatpush.bf16.msra.mxu0 %v85
  %113 = vmatpush.bf16.msra.mxu0 %v84
  %114 = vmatpush.bf16.msra.mxu0 %v83
  %115 = vmatpush.bf16.msra.mxu0 %v82
  %116 = vmatmul.bf16.gmra.mxu0 %v99
  %v117 = vpop.f32.mrf.mxu0
  %v118 = vadd.f32 0.0, %v117
  %v119 = vpop.f32.mrf.mxu0
  %v120 = vadd.f32 0.0, %v119
  %121 = vdwg.mxu0
  %v122 = vpack.c.bf16 %v118, %v118
  %v123 = vpack.c.bf16 %v120, %v120
  %v124 = vld [vmem:[%s2] sm:$0x1]
  %v126 = vpack.i.b16 %v124, %v124
  %v128 = vperm.slane %v126, 0
  %v129 = vunpack.c.l.bf16 %v122
  %v130 = vunpack.c.l.bf16 %v123
  %v131 = vunpack.c.l.bf16 %v128
  %v132 = vadd.f32 %v129, %v131
  %v133 = vadd.f32 %v130, %v131
  %v134 = vpack.c.bf16 %v132, %v132
  %v135 = vpack.c.bf16 %v133, %v133
  %v136 = vunpack.c.l.bf16 %v134
  %v137 = vunpack.c.l.bf16 %v135
  %v138 = vmax.f32 %v136, 0.0
  %v139 = vmax.f32 %v137, 0.0
  %v140 = vpack.c.bf16 %v139, %v138
  %v141 = vld [vmem:[%s3] sm:$0xff]
  %v142 = vld [vmem:[%s3 + $0x8] sm:$0xff]
  %v143 = vld [vmem:[%s3 + $0x10] sm:$0xff]
  %v144 = vld [vmem:[%s3 + $0x18] sm:$0xff]
  %v145 = vld [vmem:[%s3 + $0x20] sm:$0xff]
  %v146 = vld [vmem:[%s3 + $0x28] sm:$0xff]
  %v147 = vld [vmem:[%s3 + $0x30] sm:$0xff]
  %v148 = vld [vmem:[%s3 + $0x38] sm:$0xff]
  %v149 = vld [vmem:[%s3 + $0x40] sm:$0xff]
  %v150 = vld [vmem:[%s3 + $0x48] sm:$0xff]
  %v151 = vld [vmem:[%s3 + $0x50] sm:$0xff]
  %v152 = vld [vmem:[%s3 + $0x58] sm:$0xff]
  %v153 = vld [vmem:[%s3 + $0x60] sm:$0xff]
  %v154 = vld [vmem:[%s3 + $0x68] sm:$0xff]
  %v155 = vld [vmem:[%s3 + $0x70] sm:$0xff]
  %v156 = vld [vmem:[%s3 + $0x78] sm:$0xff]
  %v173 = vunpack.c.l.b16 %v141
  %v174 = vunpack.c.h.b16 %v141
  %v175 = vunpack.c.l.b16 %v142
  %v176 = vunpack.c.h.b16 %v142
  %v177 = vunpack.c.l.b16 %v143
  %v178 = vunpack.c.h.b16 %v143
  %v179 = vunpack.c.l.b16 %v144
  %v180 = vunpack.c.h.b16 %v144
  %v181 = vunpack.c.l.b16 %v145
  %v182 = vunpack.c.h.b16 %v145
  %v183 = vunpack.c.l.b16 %v146
  %v184 = vunpack.c.h.b16 %v146
  %v185 = vunpack.c.l.b16 %v147
  %v186 = vunpack.c.h.b16 %v147
  %v187 = vunpack.c.l.b16 %v148
  %v188 = vunpack.c.h.b16 %v148
  %v189 = vunpack.c.l.b16 %v149
  %v190 = vunpack.c.h.b16 %v149
  %v191 = vunpack.c.l.b16 %v150
  %v192 = vunpack.c.h.b16 %v150
  %v193 = vunpack.c.l.b16 %v151
  %v194 = vunpack.c.h.b16 %v151
  %v195 = vunpack.c.l.b16 %v152
  %v196 = vunpack.c.h.b16 %v152
  %v197 = vunpack.c.l.b16 %v153
  %v198 = vunpack.c.h.b16 %v153
  %v199 = vunpack.c.l.b16 %v154
  %v200 = vunpack.c.h.b16 %v154
  %v201 = vunpack.c.l.b16 %v155
  %v202 = vunpack.c.h.b16 %v155
  %v203 = vunpack.c.l.b16 %v156
  %v204 = vunpack.c.h.b16 %v156
  %v205 = vpack.c.b16 %v175, %v173
  %v206 = vpack.c.b16 %v176, %v174
  %v207 = vpack.c.b16 %v179, %v177
  %v208 = vpack.c.b16 %v180, %v178
  %v209 = vpack.c.b16 %v183, %v181
  %v210 = vpack.c.b16 %v184, %v182
  %v211 = vpack.c.b16 %v187, %v185
  %v212 = vpack.c.b16 %v188, %v186
  %v213 = vpack.c.b16 %v191, %v189
  %v214 = vpack.c.b16 %v192, %v190
  %v215 = vpack.c.b16 %v195, %v193
  %v216 = vpack.c.b16 %v196, %v194
  %v217 = vpack.c.b16 %v199, %v197
  %v218 = vpack.c.b16 %v200, %v198
  %v219 = vpack.c.b16 %v203, %v201
  %v220 = vpack.c.b16 %v204, %v202
  %237 = vmatpush.bf16.msra.mxu0 %v219
  %238 = vmatpush.bf16.msra.mxu0 %v217
  %239 = vmatpush.bf16.msra.mxu0 %v215
  %240 = vmatpush.bf16.msra.mxu0 %v213
  %241 = vmatpush.bf16.msra.mxu0 %v211
  %242 = vmatpush.bf16.msra.mxu0 %v209
  %243 = vmatpush.bf16.msra.mxu0 %v207
  %244 = vmatpush.bf16.msra.mxu0 %v205
  %245 = vmatmul.bf16.gmra.mxu0 %v140
  %v246 = vpop.f32.mrf.mxu0
  %v247 = vadd.f32 0.0, %v246
  %v248 = vpop.f32.mrf.mxu0
  %v249 = vadd.f32 0.0, %v248
  %250 = vdwg.mxu0
  %251 = vmatpush.bf16.msra.mxu0 %v220
  %252 = vmatpush.bf16.msra.mxu0 %v218
  %253 = vmatpush.bf16.msra.mxu0 %v216
  %254 = vmatpush.bf16.msra.mxu0 %v214
  %255 = vmatpush.bf16.msra.mxu0 %v212
  %256 = vmatpush.bf16.msra.mxu0 %v210
  %257 = vmatpush.bf16.msra.mxu0 %v208
  %258 = vmatpush.bf16.msra.mxu0 %v206
  %259 = vmatmul.bf16.gmra.mxu0 %v140
  %v260 = vpop.f32.mrf.mxu0
  %v261 = vadd.f32 0.0, %v260
  %v262 = vpop.f32.mrf.mxu0
  %v263 = vadd.f32 0.0, %v262
  %264 = vdwg.mxu0
  %v265 = vpack.c.bf16 %v261, %v247
  %v266 = vpack.c.bf16 %v263, %v249
  %v267 = vld [vmem:[%s4] sm:$0x3]
  %269 = vst [vmem:[#allocation1] ss:$9 sm:$0xff] %v267
  %v270 = vld [vmem:[#allocation1] sm:$0xff]
  %v271 = vld [vmem:[#allocation1 + $0x9] sm:$0xff]
  %v272 = vpack.i.b16 %v270, %v270
  %v274 = vperm.slane %v272, 0
  %v275 = vpack.i.b16 %v271, %v271
  %v277 = vperm.slane %v275, 0
  %v278 = vunpack.c.l.bf16 %v265
  %v279 = vunpack.c.h.bf16 %v265
  %v280 = vunpack.c.l.bf16 %v266
  %v281 = vunpack.c.h.bf16 %v266
  %v282 = vunpack.c.l.bf16 %v274
  %v283 = vunpack.c.l.bf16 %v277
  %v284 = vadd.f32 %v278, %v282
  %v285 = vadd.f32 %v279, %v283
  %v286 = vadd.f32 %v280, %v282
  %v287 = vadd.f32 %v281, %v283
  %v288 = vpack.c.bf16 %v285, %v284
  %v289 = vpack.c.bf16 %v287, %v286
  %v290 = vunpack.c.l.bf16 %v288
  %v291 = vunpack.c.h.bf16 %v288
  %v292 = vunpack.c.l.bf16 %v289
  %v293 = vunpack.c.h.bf16 %v289
  %v294 = vmax.f32 %v290, 0.0
  %v295 = vmax.f32 %v291, 0.0
  %v296 = vmax.f32 %v292, 0.0
  %v297 = vmax.f32 %v293, 0.0
  %v298 = vpack.c.bf16 %v296, %v294
  %v299 = vpack.c.bf16 %v297, %v295
  %v300 = vld [vmem:[%s5] sm:$0xf]
  %v301 = vld [vmem:[%s5 + $0x4] sm:$0xf]
  %v302 = vld [vmem:[%s5 + $0x8] sm:$0xf]
  %v303 = vld [vmem:[%s5 + $0xc] sm:$0xf]
  %v304 = vld [vmem:[%s5 + $0x10] sm:$0xf]
  %v305 = vld [vmem:[%s5 + $0x14] sm:$0xf]
  %v306 = vld [vmem:[%s5 + $0x18] sm:$0xf]
  %v307 = vld [vmem:[%s5 + $0x1c] sm:$0xf]
  %v308 = vld [vmem:[%s5 + $0x20] sm:$0xf]
  %v309 = vld [vmem:[%s5 + $0x24] sm:$0xf]
  %v310 = vld [vmem:[%s5 + $0x28] sm:$0xf]
  %v311 = vld [vmem:[%s5 + $0x2c] sm:$0xf]
  %v312 = vld [vmem:[%s5 + $0x30] sm:$0xf]
  %v313 = vld [vmem:[%s5 + $0x34] sm:$0xf]
  %v314 = vld [vmem:[%s5 + $0x38] sm:$0xf]
  %v315 = vld [vmem:[%s5 + $0x3c] sm:$0xf]
  %v316 = vld [vmem:[%s5 + $0x40] sm:$0xf]
  %v317 = vld [vmem:[%s5 + $0x44] sm:$0xf]
  %v318 = vld [vmem:[%s5 + $0x48] sm:$0xf]
  %v319 = vld [vmem:[%s5 + $0x4c] sm:$0xf]
  %v320 = vld [vmem:[%s5 + $0x50] sm:$0xf]
  %v321 = vld [vmem:[%s5 + $0x54] sm:$0xf]
  %v322 = vld [vmem:[%s5 + $0x58] sm:$0xf]
  %v323 = vld [vmem:[%s5 + $0x5c] sm:$0xf]
  %v324 = vld [vmem:[%s5 + $0x60] sm:$0xf]
  %v325 = vld [vmem:[%s5 + $0x64] sm:$0xf]
  %v326 = vld [vmem:[%s5 + $0x68] sm:$0xf]
  %v327 = vld [vmem:[%s5 + $0x6c] sm:$0xf]
  %v328 = vld [vmem:[%s5 + $0x70] sm:$0xf]
  %v329 = vld [vmem:[%s5 + $0x74] sm:$0xf]
  %v330 = vld [vmem:[%s5 + $0x78] sm:$0xf]
  %v331 = vld [vmem:[%s5 + $0x7c] sm:$0xf]
  %v332 = vld [vmem:[%s6] sm:$0x1]
  %v334 = vperm.slane %v332, 0
  %v368 = vunpack.c.l.b16 %v300
  %v369 = vunpack.c.l.b16 %v301
  %v370 = vunpack.c.l.b16 %v302
  %v371 = vunpack.c.l.b16 %v303
  %v372 = vunpack.c.l.b16 %v304
  %v373 = vunpack.c.l.b16 %v305
  %v374 = vunpack.c.l.b16 %v306
  %v375 = vunpack.c.l.b16 %v307
  %v376 = vunpack.c.l.b16 %v308
  %v377 = vunpack.c.l.b16 %v309
  %v378 = vunpack.c.l.b16 %v310
  %v379 = vunpack.c.l.b16 %v311
  %v380 = vunpack.c.l.b16 %v312
  %v381 = vunpack.c.l.b16 %v313
  %v382 = vunpack.c.l.b16 %v314
  %v383 = vunpack.c.l.b16 %v315
  %v384 = vunpack.c.l.b16 %v316
  %v385 = vunpack.c.l.b16 %v317
  %v386 = vunpack.c.l.b16 %v318
  %v387 = vunpack.c.l.b16 %v319
  %v388 = vunpack.c.l.b16 %v320
  %v389 = vunpack.c.l.b16 %v321
  %v390 = vunpack.c.l.b16 %v322
  %v391 = vunpack.c.l.b16 %v323
  %v392 = vunpack.c.l.b16 %v324
  %v393 = vunpack.c.l.b16 %v325
  %v394 = vunpack.c.l.b16 %v326
  %v395 = vunpack.c.l.b16 %v327
  %v396 = vunpack.c.l.b16 %v328
  %v397 = vunpack.c.l.b16 %v329
  %v398 = vunpack.c.l.b16 %v330
  %v399 = vunpack.c.l.b16 %v331
  %v400 = vpack.c.b16 %v369, %v368
  %v401 = vpack.c.b16 %v371, %v370
  %v402 = vpack.c.b16 %v373, %v372
  %v403 = vpack.c.b16 %v375, %v374
  %v404 = vpack.c.b16 %v377, %v376
  %v405 = vpack.c.b16 %v379, %v378
  %v406 = vpack.c.b16 %v381, %v380
  %v407 = vpack.c.b16 %v383, %v382
  %v408 = vpack.c.b16 %v385, %v384
  %v409 = vpack.c.b16 %v387, %v386
  %v410 = vpack.c.b16 %v389, %v388
  %v411 = vpack.c.b16 %v391, %v390
  %v412 = vpack.c.b16 %v393, %v392
  %v413 = vpack.c.b16 %v395, %v394
  %v414 = vpack.c.b16 %v397, %v396
  %v415 = vpack.c.b16 %v399, %v398
  %432 = vmatpush.bf16.msra.mxu0 %v407
  %433 = vmatpush.bf16.msra.mxu0 %v406
  %434 = vmatpush.bf16.msra.mxu0 %v405
  %435 = vmatpush.bf16.msra.mxu0 %v404
  %436 = vmatpush.bf16.msra.mxu0 %v403
  %437 = vmatpush.bf16.msra.mxu0 %v402
  %438 = vmatpush.bf16.msra.mxu0 %v401
  %439 = vmatpush.bf16.msra.mxu0 %v400
  %440 = vmatmul.bf16.gmra.mxu0 %v298
  %v441 = vpop.f32.mrf.mxu0
  %v442 = vadd.f32 %v334, %v441
  %v443 = vpop.f32.mrf.mxu0
  %v444 = vadd.f32 %v334, %v443
  %445 = vdwg.mxu0
  %446 = vmatpush.bf16.msra.mxu0 %v415
  %447 = vmatpush.bf16.msra.mxu0 %v414
  %448 = vmatpush.bf16.msra.mxu0 %v413
  %449 = vmatpush.bf16.msra.mxu0 %v412
  %450 = vmatpush.bf16.msra.mxu0 %v411
  %451 = vmatpush.bf16.msra.mxu0 %v410
  %452 = vmatpush.bf16.msra.mxu0 %v409
  %453 = vmatpush.bf16.msra.mxu0 %v408
  %454 = vmatmul.bf16.gmra.mxu0 %v299
  %v455 = vpop.f32.mrf.mxu0
  %v456 = vadd.f32 %v442, %v455
  %v457 = vpop.f32.mrf.mxu0
  %v458 = vadd.f32 %v444, %v457
  %459 = vdwg.mxu0
  %v460 = vmax.f32 %v456, 0.0
  %v461 = vmax.f32 %v458, 0.0
  %v462 = vld [vmem:[%s7] sm:$0x1]
  %v464 = vperm.slane %v462, 0
  %v466 = vmul.f32 %v460, %v464
  %v467 = vmul.f32 %v461, %v464
  %vm468 = vcmask 523264
  %v469 = vsel %vm468, %v466, 0.0
  %470 = vadd.xlane.f32.xlu0 %v469
  %v471 = vpop.xlane.xlu0 %470
  %v472 = vsel %vm468, %v467, 0.0
  %473 = vadd.xlane.f32.xlu0 %v472
  %v474 = vpop.xlane.xlu0 %473
  %v475 = vld [vmem:[#allocation2] sm:$0x1]
  %v477 = vperm.slane %v475, 0
  %v479 = vadd.f32 %v471, %v477
  %v480 = vadd.f32 %v474, %v477
  %vm481 = vcmask 7168
  %482 = vst.msk [vmem:[%s9] sm:$0xff] %vm481, %v479
  %483 = vst.msk [vmem:[%s9 + $0x8] sm:$0xff] %vm481, %v480
  // Predicated region
  $region38: #{aftershock_classifier.1} parent=0 // pred_check
    _
  $region39: #{aftershock_classifier.1} parent=0 // pred_check_branch
    %485 = sbr.rel (0) target = $region41
  $region40: #{aftershock_classifier.1} parent=0 // pred_region
    _
  $region41: #{aftershock_classifier.1} parent=0 // pred_fallthru
    _
  // Predicated region
  $region42: #{aftershock_classifier.1} parent=0 // pred_check
    _
  $region43: #{aftershock_classifier.1} parent=0 // pred_check_branch
    %487 = sbr.rel (0) target = $region45
  $region44: #{aftershock_classifier.1} parent=0 // pred_region
    _
  $region45: #{aftershock_classifier.1} parent=0 // pred_fallthru
    _

</llo_original>
